<compile_context>
chip_gen: v5e
topology: v5e:2x2
jax: 0.10.0
libtpu: 0.0.40
codegen_flags: <defaults>
</compile_context>

<pallas_src>
import functools

import jax
import jax.numpy as jnp
from jax.experimental import pallas as pl
from jax.experimental.pallas import tpu as pltpu

LANES = 128
SUBLANES = 8
ROW_ALIGN = 32     # block sublane granularity safe for f32 / bf16 / int8 inputs


def _cdiv(a, b):
    return -(-a // b)


def _round_up(a, b):
    return _cdiv(a, b) * b


def _tpu_generation():
    """Best-effort TPU generation from device_kind (0 if unknown)."""
    try:
        kind = jax.devices()[0].device_kind.lower()
    except Exception:
        return 0
    for gen in (7, 6, 5, 4):
        if f"v{gen}" in kind or f"{gen}x" in kind or f"{gen}e" in kind:
            return gen
    return 0


def _focal_loss_kernel(x_ref, t_ref, out_ref, *, alpha, gamma, rows_valid,
                       blocks_per_core, block_rows, needs_mask):
    """Accumulate per-core partial sums into a resident (8, 128) output tile."""
    i = pl.program_id(1)

    @pl.when(i == 0)
    def _():
        out_ref[...] = jnp.zeros_like(out_ref)

    # Per-tile cast in VMEM (free here; a wrapper-side astype would be an extra
    # full read+write HBM pass).  bf16 inputs therefore stream at half traffic.
    x = x_ref[...].astype(jnp.float32)      # probabilities in [0, 1]
    t = t_ref[...].astype(jnp.float32)      # targets in [0, 1]

    # sigmoid(x) == 0.5*tanh(0.5*x) + 0.5: one EUP transcendental instead of
    # exp + reciprocal -- matters most on v7x where the kernel nears EUP-bound.
    prob = 0.5 * jnp.tanh(0.5 * x) + 0.5

    # F.binary_cross_entropy(inputs, targets, reduction='none') on
    # probabilities; PyTorch clamps each log term at -100, so x == 0, t == 0
    # (the <128-element lane pad) contributes exactly zero.
    log_x = jnp.maximum(jnp.log(x), -100.0)
    log_1mx = jnp.maximum(jnp.log(1.0 - x), -100.0)
    ce = -(t * log_x + (1.0 - t) * log_1mx)

    p_t = prob * t + (1.0 - prob) * (1.0 - t)
    focal = 1.0 - p_t
    if gamma == 2.0:                                   # static: avoid float pow
        w = focal * focal
    elif gamma >= 0.0 and gamma == float(int(gamma)):  # other integer gammas
        w = jnp.ones_like(focal)
        for _ in range(int(gamma)):
            w = w * focal
    else:
        w = focal ** gamma
    loss = ce * w

    if alpha >= 0:   # static Python branch, mirrors `if self.alpha >= 0`
        alpha_t = alpha * t + (1.0 - alpha) * (1.0 - t)
        loss = alpha_t * loss

    if needs_mask:
        # Rows at/after `rows_valid` are out-of-bounds garbage from the partial
        # last-block DMA (or a fully-OOB clamped block on the 2nd core).
        # Select -- NOT multiply (NaN * 0 == NaN) -- them to zero.
        start = (pl.program_id(0) * blocks_per_core + i) * block_rows
        rid = jax.lax.broadcasted_iota(jnp.int32, loss.shape, 0)
        loss = jnp.where(rid < rows_valid - start, loss, 0.0)

    # Fold the block onto one (8,128) vreg tile: element-wise adds only
    # (reshape splits the sublane axis; no (8,128) tile boundary is crossed).
    out_ref[...] += jnp.sum(loss.reshape(-1, SUBLANES, LANES), axis=0)


def focal_loss(inputs, targets, alpha: float = 0.25, gamma: float = 2.0,
               reduction: str = "mean", *, block_rows=None, num_cores=None):
    # TODO(synk): the module's forward() always returns loss.mean() and never
    # consults self.reduction, so only the mean path is implemented.
    n = int(inputs.size)
    x = inputs.reshape(-1)     # row-major flatten: layout bitcast, no HBM pass
    t = targets.reshape(-1)

    rem = n % LANES
    if rem:
        # Rare lane-misaligned total: pad only the final partial 128-lane row
        # with zeros (ce(0, 0) == 0 exactly, so the pad contributes nothing).
        # This is the only remaining O(N) pre-pass and never fires for totals
        # that are multiples of 128.
        pad = LANES - rem
        x = jnp.concatenate([x, jnp.zeros((pad,), x.dtype)])
        t = jnp.concatenate([t, jnp.zeros((pad,), t.dtype)])
    rows = _cdiv(n, LANES)
    x2 = x.reshape(rows, LANES)
    t2 = t.reshape(rows, LANES)

    # Generation-aware tiling: big blocks kill the ~0.35 us/step grid overhead.
    gen = _tpu_generation()
    if gen >= 7:      # v7x: 2 TensorCores; 8192-row f32 blocks = 16 MiB buffered
        auto_cores, auto_rows, vmem_limit = 2, 8192, 32 << 20
    elif gen == 6:    # v6e: same block size, single core
        auto_cores, auto_rows, vmem_limit = 1, 8192, 32 << 20
    elif gen == 5:    # v5e: 4096-row blocks (8 MiB double-buffered)
        auto_cores, auto_rows, vmem_limit = 1, 4096, 32 << 20
    else:             # unknown chip: previously-validated conservative config
        auto_cores, auto_rows, vmem_limit = 1, 2048, None
    cores = auto_cores if num_cores is None else int(num_cores)
    max_rows = auto_rows if block_rows is None else _round_up(int(block_rows),
                                                              ROW_ALIGN)

    rows_per_core = _cdiv(rows, cores)
    blk_rows = min(max_rows, _round_up(rows_per_core, ROW_ALIGN))
    blocks_per_core = _cdiv(rows_per_core, blk_rows)
    covered_rows = cores * blocks_per_core * blk_rows
    needs_mask = covered_rows != rows
    last_block = _cdiv(rows, blk_rows) - 1   # last block index with valid rows

    kernel = functools.partial(
        _focal_loss_kernel, alpha=float(alpha), gamma=float(gamma),
        rows_valid=rows, blocks_per_core=blocks_per_core, block_rows=blk_rows,
        needs_mask=needs_mask)

    def in_map(c, i):
        # Clamp fully out-of-bounds block indices (possible for the 2nd core on
        # small inputs) onto the last valid block; the in-kernel mask (keyed on
        # the *unclamped* grid position) zeroes their contribution.
        return (jnp.minimum(c * blocks_per_core + i, last_block), 0)

    partial_sums = pl.pallas_call(
        kernel,
        out_shape=jax.ShapeDtypeStruct((cores * SUBLANES, LANES), jnp.float32),
        grid_spec=pltpu.PrefetchScalarGridSpec(
            num_scalar_prefetch=0,
            grid=(cores, blocks_per_core),
            in_specs=[
                pl.BlockSpec((blk_rows, LANES), in_map),
                pl.BlockSpec((blk_rows, LANES), in_map),
            ],
            out_specs=pl.BlockSpec((SUBLANES, LANES), lambda c, i: (c, 0)),
        ),
        compiler_params=pltpu.CompilerParams(
            # TODO(synk): on v7x, verify in xprof that the leading axis really
            # shards across both TensorCores; if not, switch to CORE_PARALLEL.
            dimension_semantics=("parallel", "arbitrary"),
            vmem_limit_bytes=vmem_limit),
    )(x2, t2)

    # Tiny XLA epilogue: cross-lane reduce of the per-core partials + divide.
    return jnp.sum(partial_sums) / n


def _reference(inputs, targets, alpha, gamma):
    x = inputs.astype(jnp.float32)
    t = targets.astype(jnp.float32)
    prob = jax.nn.sigmoid(x)
    ce = -(t * jnp.maximum(jnp.log(x), -100.0)
           + (1.0 - t) * jnp.maximum(jnp.log(1.0 - x), -100.0))
    p_t = prob * t + (1.0 - prob) * (1.0 - t)
    loss = ce * (1.0 - p_t) ** gamma
    if alpha >= 0:
        loss = (alpha * t + (1.0 - alpha) * (1.0 - t)) * loss
    return loss.mean()


if __name__ == "__main__":
    key = jax.random.PRNGKey(0)

    # Small NCHW-shaped cases (F.binary_cross_entropy wants probabilities ->
    # uniform(0,1)).  They exercise: lane-aligned zero-copy + OOB row masking,
    # the lane-misaligned tiny-pad path, the exact-coverage (no-mask) path,
    # multi-step grid accumulation, and the 2-core split with a clamped
    # fully-out-of-bounds block.
    cases = [
        dict(shape=(2, 4, 16, 16)),
        dict(shape=(2, 3, 7, 9)),
        dict(shape=(4, 4, 24, 128)),
        dict(shape=(2, 4, 63, 64), block_rows=64),
        dict(shape=(2, 4, 16, 16), block_rows=32, num_cores=2),
    ]
    for case in cases:
        shape = case["shape"]
        key, k_in, k_tg = jax.random.split(key, 3)
        inputs = jax.random.uniform(k_in, shape, dtype=jnp.float32,
                                    minval=1e-4, maxval=1.0 - 1e-4)
        targets = (jax.random.uniform(k_tg, shape) > 0.5).astype(jnp.float32)

        loss = focal_loss(inputs, targets, alpha=0.25, gamma=2.0,
                          reduction="mean",
                          block_rows=case.get("block_rows"),
                          num_cores=case.get("num_cores"))
        loss = jax.block_until_ready(loss)

        ref = _reference(inputs, targets, 0.25, 2.0)
        assert jnp.allclose(loss, ref, rtol=1e-4, atol=1e-6), \
            (shape, float(loss), float(ref))

    print("KERNEL_OK")
</pallas_src>

<mosaic_0001>
module attributes {stable_mosaic.version = 11 : i64} {
  func.func @_focal_loss_kernel(%arg0: i32, %arg1: i32, %arg2: memref<32x128xf32, #tpu.memory_space<vmem>>, %arg3: memref<32x128xf32, #tpu.memory_space<vmem>>, %arg4: memref<8x128xf32, #tpu.memory_space<vmem>>) attributes {dimension_semantics = [#tpu.dimension_semantics<parallel>, #tpu.dimension_semantics<arbitrary>], iteration_bounds = array<i64: 1, 1>, scalar_prefetch = 0 : i64, scratch_operands = 0 : i64, tpu.core_type = #tpu.core_type<tc>, window_params = [{transform_indices = @transform_0, window_bounds = array<i64: 32, 128>}, {transform_indices = @transform_1, window_bounds = array<i64: 32, 128>}, {transform_indices = @transform_2, window_bounds = array<i64: 8, 128>}]} {
    %c0_i32 = arith.constant 0 : i32
    %0 = arith.cmpi eq, %arg1, %c0_i32 : i32
    %1 = arith.extui %0 : i1 to i32
    %c0_i32_0 = arith.constant 0 : i32
    %2 = arith.cmpi ne, %1, %c0_i32_0 : i32
    scf.if %2 {
      %cst_23 = arith.constant 0.000000e+00 : f32
      %60 = vector.broadcast %cst_23 : f32 to vector<8x128xf32>
      %c0_24 = arith.constant 0 : index
      %c0_25 = arith.constant 0 : index
      %61 = vector.load %arg4[%c0_24, %c0_25] : memref<8x128xf32, #tpu.memory_space<vmem>>, vector<8x128xf32>
      tpu.vector_store %arg4[%c0_24, %c0_25], %60 {strides = array<i32>} : memref<8x128xf32, #tpu.memory_space<vmem>>, vector<8x128xf32>,
    } else {
    }
    %c0 = arith.constant 0 : index
    %c0_1 = arith.constant 0 : index
    %3 = vector.load %arg2[%c0, %c0_1] : memref<32x128xf32, #tpu.memory_space<vmem>>, vector<32x128xf32>
    %c0_2 = arith.constant 0 : index
    %c0_3 = arith.constant 0 : index
    %4 = vector.load %arg3[%c0_2, %c0_3] : memref<32x128xf32, #tpu.memory_space<vmem>>, vector<32x128xf32>
    %cst = arith.constant 5.000000e-01 : f32
    %5 = vector.broadcast %cst : f32 to vector<32x128xf32>
    %6 = arith.mulf %5, %3 : vector<32x128xf32>
    %7 = math.tanh %6 : vector<32x128xf32>
    %cst_4 = arith.constant 5.000000e-01 : f32
    %8 = vector.broadcast %cst_4 : f32 to vector<32x128xf32>
    %9 = arith.mulf %8, %7 : vector<32x128xf32>
    %cst_5 = arith.constant 5.000000e-01 : f32
    %10 = vector.broadcast %cst_5 : f32 to vector<32x128xf32>
    %11 = arith.addf %9, %10 : vector<32x128xf32>
    %12 = math.log %3 : vector<32x128xf32>
    %cst_6 = arith.constant -1.000000e+02 : f32
    %13 = vector.broadcast %cst_6 : f32 to vector<32x128xf32>
    %14 = arith.maximumf %12, %13 : vector<32x128xf32>
    %cst_7 = arith.constant 1.000000e+00 : f32
    %15 = vector.broadcast %cst_7 : f32 to vector<32x128xf32>
    %16 = arith.subf %15, %3 : vector<32x128xf32>
    %17 = math.log %16 : vector<32x128xf32>
    %cst_8 = arith.constant -1.000000e+02 : f32
    %18 = vector.broadcast %cst_8 : f32 to vector<32x128xf32>
    %19 = arith.maximumf %17, %18 : vector<32x128xf32>
    %20 = arith.mulf %4, %14 : vector<32x128xf32>
    %cst_9 = arith.constant 1.000000e+00 : f32
    %21 = vector.broadcast %cst_9 : f32 to vector<32x128xf32>
    %22 = arith.subf %21, %4 : vector<32x128xf32>
    %23 = arith.mulf %22, %19 : vector<32x128xf32>
    %24 = arith.addf %20, %23 : vector<32x128xf32>
    %cst_10 = arith.constant 0.000000e+00 : f32
    %25 = vector.broadcast %cst_10 : f32 to vector<32x128xf32>
    %26 = arith.subf %25, %24 : vector<32x128xf32>
    %27 = arith.mulf %11, %4 : vector<32x128xf32>
    %cst_11 = arith.constant 1.000000e+00 : f32
    %28 = vector.broadcast %cst_11 : f32 to vector<32x128xf32>
    %29 = arith.subf %28, %11 : vector<32x128xf32>
    %cst_12 = arith.constant 1.000000e+00 : f32
    %30 = vector.broadcast %cst_12 : f32 to vector<32x128xf32>
    %31 = arith.subf %30, %4 : vector<32x128xf32>
    %32 = arith.mulf %29, %31 : vector<32x128xf32>
    %33 = arith.addf %27, %32 : vector<32x128xf32>
    %cst_13 = arith.constant 1.000000e+00 : f32
    %34 = vector.broadcast %cst_13 : f32 to vector<32x128xf32>
    %35 = arith.subf %34, %33 : vector<32x128xf32>
    %36 = arith.mulf %35, %35 : vector<32x128xf32>
    %37 = arith.mulf %26, %36 : vector<32x128xf32>
    %cst_14 = arith.constant 2.500000e-01 : f32
    %38 = vector.broadcast %cst_14 : f32 to vector<32x128xf32>
    %39 = arith.mulf %38, %4 : vector<32x128xf32>
    %cst_15 = arith.constant 1.000000e+00 : f32
    %40 = vector.broadcast %cst_15 : f32 to vector<32x128xf32>
    %41 = arith.subf %40, %4 : vector<32x128xf32>
    %cst_16 = arith.constant 7.500000e-01 : f32
    %42 = vector.broadcast %cst_16 : f32 to vector<32x128xf32>
    %43 = arith.mulf %42, %41 : vector<32x128xf32>
    %44 = arith.addf %39, %43 : vector<32x128xf32>
    %45 = arith.mulf %44, %37 : vector<32x128xf32>
    %c1_i32 = arith.constant 1 : i32
    %46 = arith.muli %arg0, %c1_i32 : i32
    %47 = arith.addi %46, %arg1 : i32
    %c32_i32 = arith.constant 32 : i32
    %48 = arith.muli %47, %c32_i32 : i32
    %49 = tpu.iota {dimensions = array<i32: 0>} : vector<32x128xi32>
    %c16_i32 = arith.constant 16 : i32
    %50 = arith.subi %c16_i32, %48 : i32
    %51 = vector.broadcast %50 : i32 to vector<32x128xi32>
    %52 = arith.cmpi slt, %49, %51 : vector<32x128xi32>
    %cst_17 = arith.constant 0.000000e+00 : f32
    %53 = vector.broadcast %cst_17 : f32 to vector<32x128xf32>
    %54 = arith.select %52, %45, %53 : vector<32x128xi1>, vector<32x128xf32>
    %c0_18 = arith.constant 0 : index
    %c0_19 = arith.constant 0 : index
    %55 = vector.load %arg4[%c0_18, %c0_19] : memref<8x128xf32, #tpu.memory_space<vmem>>, vector<8x128xf32>
    %56 = vector.shape_cast %54 : vector<32x128xf32> to vector<4x8x128xf32>
    %cst_20 = arith.constant dense<0.000000e+00> : vector<8x128xf32>
    %57 = vector.multi_reduction <add>, %56, %cst_20 [0] : vector<4x8x128xf32> to vector<8x128xf32>
    %58 = arith.addf %55, %57 : vector<8x128xf32>
    %c0_21 = arith.constant 0 : index
    %c0_22 = arith.constant 0 : index
    %59 = vector.load %arg4[%c0_21, %c0_22] : memref<8x128xf32, #tpu.memory_space<vmem>>, vector<8x128xf32>
    tpu.vector_store %arg4[%c0_21, %c0_22], %58 {strides = array<i32>} : memref<8x128xf32, #tpu.memory_space<vmem>>, vector<8x128xf32>,
    return
  }
  func.func @transform_0(%arg0: i32, %arg1: i32) -> (i32, i32) {
    %c1_i32 = arith.constant 1 : i32
    %0 = arith.muli %arg0, %c1_i32 : i32
    %1 = arith.addi %0, %arg1 : i32
    %c0_i32 = arith.constant 0 : i32
    %2 = arith.minsi %1, %c0_i32 : i32
    %c0_i32_0 = arith.constant 0 : i32
    %c0_i32_1 = arith.constant 0 : i32
    return %2, %c0_i32_0 : i32, i32
  }
  func.func @transform_1(%arg0: i32, %arg1: i32) -> (i32, i32) {
    %c1_i32 = arith.constant 1 : i32
    %0 = arith.muli %arg0, %c1_i32 : i32
    %1 = arith.addi %0, %arg1 : i32
    %c0_i32 = arith.constant 0 : i32
    %2 = arith.minsi %1, %c0_i32 : i32
    %c0_i32_0 = arith.constant 0 : i32
    %c0_i32_1 = arith.constant 0 : i32
    return %2, %c0_i32_0 : i32, i32
  }
  func.func @transform_2(%arg0: i32, %arg1: i32) -> (i32, i32) {
    %c0_i32 = arith.constant 0 : i32
    %c0_i32_0 = arith.constant 0 : i32
    return %arg0, %c0_i32 : i32, i32
  }
}

</mosaic_0001>

<llo_original>
// kernel: tpu_custom_call.1
$region0: #{tpu_custom_call.1}
  #allocation0 [shape = 'u32[]', space=smem, size = 0x4, offset = 0x4, fixed_abs, tag = 'smem constant byte address 0x4 - core index']
  #allocation1 [shape = 'u32[72,128]{1,0:T(1,128)}', space=vmem, size = 0x9000, scoped, tag = 'internal scratch']
  %s0 = inlined_call_operand.hbm [shape: f32[16,128], index: 0, kind: input, shape index: {}]
  %s1 = inlined_call_operand.hbm [shape: f32[16,128], index: 1, kind: input, shape index: {}]
  %s2 = inlined_call_operand.hbm [shape: f32[8,128], index: 2, kind: output, shape index: {}]
  %s3 = sld [smem:[#allocation0]]
  $region30: #{tpu_custom_call.1} parent=0
    _
  %s5 = ssub.s32 1, %s3
  %s6 = scalar_select 0, %s5, %s3
  $region1: #{tpu_custom_call.1} parent=0
    #allocation2 [shape = 'u8[16384]{0}', space=vmem, size = 0x4000, scoped, tag = 'input window, operand 0, single buffered']
    #allocation3 [shape = 's32[1]{0}', space=sflag, size = 0x4, scoped, tag = 'scoped memory for tpu_custom_call.1']
    #allocation4 [shape = 's32[1]{0}', space=sflag, size = 0x4, scoped, tag = 'scoped memory for tpu_custom_call.1']
    #allocation5 [shape = 'u8[16384]{0}', space=vmem, size = 0x4000, scoped, tag = 'input window, operand 1, single buffered']
    #allocation6 [shape = 's32[1]{0}', space=sflag, size = 0x4, scoped, tag = 'scoped memory for tpu_custom_call.1']
    #allocation7 [shape = 'u8[4096]{0}', space=vmem, size = 0x1000, scoped, tag = 'output window, operand 0, single buffered']
    %7 = vsyncpa [#allocation3], 0
    %8 = vsyncpa [#allocation6], 0
    %9 = vsyncpa [#allocation4], 0
    // Predicated region
    $region2: #{tpu_custom_call.1} parent=1 // pred_check
      _
    $region3: #{tpu_custom_call.1} parent=1 // pred_check_branch
      %11 = sbr.rel (0) target = $region5
    $region4: #{tpu_custom_call.1} parent=1 // pred_region
      %s12 = sadd.s32 0, 0
      %p13 = scmp.lt.s32.totalorder %s12, 0
      %s14 = scalar_select %p13, %s12, 0
      %s15 = smul.u32 4, %s14
      %s16 = ssub.s32 2, %s15
      %s17 = smul.u32 8, %s16
      %s18 = ssub.s32 32, %s17
      %s19 = sshll.u32 %s18, 4
      %20 = vsyncadd [#allocation3], %s19
      %p21 = scmp.ne.s32.totalorder 0, %s17
      %s22 = smul.addr %s15, 8
      %s23 = scalar_lea.hbm %s0, %s22
      %s24 = smul.u32 8, %s16
      %s25 = sshll.u32 %s23, 4
      %s26 = int_to_ptr.hbm [resolvable:$true] %s25
      %s27 = sshll.u32 [#allocation2], 4
      %s28 = int_to_ptr.vmem [resolvable:$true] %s27
      %s29 = sshll.u32 %s24, 4
      %33 = dma.hbm_to_vmem [thread:$0]  (%p21), %s26, %s29, %s28, [#allocation3], 128, 128, 8
    $region5: #{tpu_custom_call.1} parent=1 // pred_fallthru
      _
    // Predicated region
    $region6: #{tpu_custom_call.1} parent=1 // pred_check
      _
    $region7: #{tpu_custom_call.1} parent=1 // pred_check_branch
      %35 = sbr.rel (0) target = $region9
    $region8: #{tpu_custom_call.1} parent=1 // pred_region
      %s36 = sadd.s32 0, 0
      %p37 = scmp.lt.s32.totalorder %s36, 0
      %s38 = scalar_select %p37, %s36, 0
      %s39 = smul.u32 4, %s38
      %s40 = ssub.s32 2, %s39
      %s41 = smul.u32 8, %s40
      %s42 = ssub.s32 32, %s41
      %s43 = sshll.u32 %s42, 4
      %44 = vsyncadd [#allocation6], %s43
      %p45 = scmp.ne.s32.totalorder 0, %s41
      %s46 = smul.addr %s39, 8
      %s47 = scalar_lea.hbm %s1, %s46
      %s48 = smul.u32 8, %s40
      %s49 = sshll.u32 %s47, 4
      %s50 = int_to_ptr.hbm [resolvable:$true] %s49
      %s51 = sshll.u32 [#allocation5], 4
      %s52 = int_to_ptr.vmem [resolvable:$true] %s51
      %s53 = sshll.u32 %s48, 4
      %57 = dma.hbm_to_vmem [thread:$0]  (%p45), %s50, %s53, %s52, [#allocation6], 128, 128, 8
    $region9: #{tpu_custom_call.1} parent=1 // pred_fallthru
      _
    // Predicated region
    $region10: #{tpu_custom_call.1} parent=1 // pred_check
      _
    $region11: #{tpu_custom_call.1} parent=1 // pred_check_branch
      %59 = sbr.rel (0) target = $region13
    $region12: #{tpu_custom_call.1} parent=1 // pred_region
      %61 = dma.done [#allocation3], 512
    $region13: #{tpu_custom_call.1} parent=1 // pred_fallthru
      _
    // Predicated region
    $region14: #{tpu_custom_call.1} parent=1 // pred_check
      _
    $region15: #{tpu_custom_call.1} parent=1 // pred_check_branch
      %63 = sbr.rel (0) target = $region17
    $region16: #{tpu_custom_call.1} parent=1 // pred_region
      %65 = dma.done [#allocation6], 512
    $region17: #{tpu_custom_call.1} parent=1 // pred_fallthru
      _
    %s66 = sadd.s32 0, 0
    %p67 = scmp.lt.s32.totalorder %s66, 0
    %s68 = scalar_select %p67, %s66, 0
    %s69 = smul.u32 4, %s68
    %s70 = ssub.s32 2, %s69
    %s71 = smul.u32 8, %s70
    %s72 = sadd.s32 0, 0
    %p73 = scmp.lt.s32.totalorder %s72, 0
    %s74 = scalar_select %p73, %s72, 0
    %s75 = smul.u32 4, %s74
    %s76 = ssub.s32 2, %s75
    %s77 = smul.u32 8, %s76
    %p78 = scmp.eq.s32.totalorder 0, 0
    // Predicated region
    $region18: #{tpu_custom_call.1} parent=1 // pred_check
      %p79 = pneg %p78
    $region19: #{tpu_custom_call.1} parent=1 // pred_check_branch
      %81 = sbr.rel (%p79) target = $region21
    $region20: #{tpu_custom_call.1} parent=1 // pred_region
      %82 = vst [vmem:[#allocation7] sm:$0xff] 0.0
    $region21: #{tpu_custom_call.1} parent=1 // pred_fallthru
      _
    %v83 = vld [vmem:[#allocation2] sm:$0xff]
    %v84 = vld [vmem:[#allocation2 + $0x8] sm:$0xff]
    %v85 = vld [vmem:[#allocation2 + $0x10] sm:$0xff]
    %v86 = vld [vmem:[#allocation2 + $0x18] sm:$0xff]
    %v87 = vld [vmem:[#allocation5] sm:$0xff]
    %v88 = vld [vmem:[#allocation5 + $0x8] sm:$0xff]
    %v89 = vld [vmem:[#allocation5 + $0x10] sm:$0xff]
    %v90 = vld [vmem:[#allocation5 + $0x18] sm:$0xff]
    %v91 = vmul.f32 %v83, 0.5
    %v92 = vmul.f32 %v84, 0.5
    %v93 = vmul.f32 %v85, 0.5
    %v94 = vmul.f32 %v86, 0.5
    %v95 = vtanh.pop %v91
    %v96 = vtanh.pop %v92
    %v97 = vtanh.pop %v93
    %v98 = vtanh.pop %v94
    %v99 = vmul.f32 %v95, 0.5
    %v100 = vmul.f32 %v96, 0.5
    %v101 = vmul.f32 %v97, 0.5
    %v102 = vmul.f32 %v98, 0.5
    %v103 = vadd.f32 %v99, 0.5
    %v104 = vadd.f32 %v100, 0.5
    %v105 = vadd.f32 %v101, 0.5
    %v106 = vadd.f32 %v102, 0.5
    %v107 = vlog2.pop %v83
    %v108 = vmul.f32 %v107, 0.6931472
    %v109 = vlog2.pop %v84
    %v110 = vmul.f32 %v109, 0.6931472
    %v111 = vlog2.pop %v85
    %v112 = vmul.f32 %v111, 0.6931472
    %v113 = vlog2.pop %v86
    %v114 = vmul.f32 %v113, 0.6931472
    %v115 = vmax.f32 %v108, -100.0
    %v116 = vmax.f32 %v110, -100.0
    %v117 = vmax.f32 %v112, -100.0
    %v118 = vmax.f32 %v114, -100.0
    %v119 = vsub.f32 1.0, %v83
    %v120 = vsub.f32 1.0, %v84
    %v121 = vsub.f32 1.0, %v85
    %v122 = vsub.f32 1.0, %v86
    %v123 = vlog2.pop %v119
    %v124 = vmul.f32 %v123, 0.6931472
    %v125 = vlog2.pop %v120
    %v126 = vmul.f32 %v125, 0.6931472
    %v127 = vlog2.pop %v121
    %v128 = vmul.f32 %v127, 0.6931472
    %v129 = vlog2.pop %v122
    %v130 = vmul.f32 %v129, 0.6931472
    %v131 = vmax.f32 %v124, -100.0
    %v132 = vmax.f32 %v126, -100.0
    %v133 = vmax.f32 %v128, -100.0
    %v134 = vmax.f32 %v130, -100.0
    %v135 = vmul.f32 %v87, %v115
    %v136 = vmul.f32 %v88, %v116
    %v137 = vmul.f32 %v89, %v117
    %v138 = vmul.f32 %v90, %v118
    %v139 = vsub.f32 1.0, %v87
    %v140 = vsub.f32 1.0, %v88
    %v141 = vsub.f32 1.0, %v89
    %v142 = vsub.f32 1.0, %v90
    %v143 = vmul.f32 %v139, %v131
    %v144 = vmul.f32 %v140, %v132
    %v145 = vmul.f32 %v141, %v133
    %v146 = vmul.f32 %v142, %v134
    %v147 = vadd.f32 %v135, %v143
    %v148 = vadd.f32 %v136, %v144
    %v149 = vadd.f32 %v137, %v145
    %v150 = vadd.f32 %v138, %v146
    %v151 = vsub.f32 0.0, %v147
    %v152 = vsub.f32 0.0, %v148
    %v153 = vsub.f32 0.0, %v149
    %v154 = vsub.f32 0.0, %v150
    %v155 = vmul.f32 %v103, %v87
    %v156 = vmul.f32 %v104, %v88
    %v157 = vmul.f32 %v105, %v89
    %v158 = vmul.f32 %v106, %v90
    %v159 = vsub.f32 1.0, %v103
    %v160 = vsub.f32 1.0, %v104
    %v161 = vsub.f32 1.0, %v105
    %v162 = vsub.f32 1.0, %v106
    %v163 = vmul.f32 %v159, %v139
    %v164 = vmul.f32 %v160, %v140
    %v165 = vmul.f32 %v161, %v141
    %v166 = vmul.f32 %v162, %v142
    %v167 = vadd.f32 %v155, %v163
    %v168 = vadd.f32 %v156, %v164
    %v169 = vadd.f32 %v157, %v165
    %v170 = vadd.f32 %v158, %v166
    %v171 = vsub.f32 1.0, %v167
    %v172 = vsub.f32 1.0, %v168
    %v173 = vsub.f32 1.0, %v169
    %v174 = vsub.f32 1.0, %v170
    %v175 = vmul.f32 %v171, %v171
    %v176 = vmul.f32 %v172, %v172
    %v177 = vmul.f32 %v173, %v173
    %v178 = vmul.f32 %v174, %v174
    %v179 = vmul.f32 %v151, %v175
    %v180 = vmul.f32 %v152, %v176
    %v181 = vmul.f32 %v153, %v177
    %v182 = vmul.f32 %v154, %v178
    %v183 = vmul.f32 %v87, 0.25
    %v184 = vmul.f32 %v88, 0.25
    %v185 = vmul.f32 %v89, 0.25
    %v186 = vmul.f32 %v90, 0.25
    %v187 = vmul.f32 %v139, 0.75
    %v188 = vmul.f32 %v140, 0.75
    %v189 = vmul.f32 %v141, 0.75
    %v190 = vmul.f32 %v142, 0.75
    %v191 = vadd.f32 %v183, %v187
    %v192 = vadd.f32 %v184, %v188
    %v193 = vadd.f32 %v185, %v189
    %v194 = vadd.f32 %v186, %v190
    %v195 = vmul.f32 %v191, %v179
    %v196 = vmul.f32 %v192, %v180
    %v197 = vmul.f32 %v193, %v181
    %v198 = vmul.f32 %v194, %v182
    %s199 = sadd.s32 0, 0
    %s200 = smul.u32 %s199, 32
    %v201 = vlaneseq
    %v202 = vshrl.u32 %v201, 7
    %v203 = vadd.s32 %v202, 8
    %v204 = vadd.s32 %v202, 16
    %v205 = vadd.s32 %v202, 24
    %s206 = ssub.s32 16, %s200
    %v207 = vstv %s206
    %vm208 = vcmp.lt.s32.totalorder %v202, %v207
    %vm209 = vcmp.lt.s32.totalorder %v203, %v207
    %vm210 = vcmp.lt.s32.totalorder %v204, %v207
    %vm211 = vcmp.lt.s32.totalorder %v205, %v207
    %v212 = vsel %vm208, %v195, 0.0
    %v213 = vsel %vm209, %v196, 0.0
    %v214 = vsel %vm210, %v197, 0.0
    %v215 = vsel %vm211, %v198, 0.0
    %v216 = vld [vmem:[#allocation7] sm:$0xff]
    %v217 = vadd.f32 %v212, %v213
    %v218 = vadd.f32 %v217, %v214
    %v219 = vadd.f32 %v218, %v215
    %v220 = vadd.f32 %v216, %v219
    %221 = vst [vmem:[#allocation7] sm:$0xff] %v220
    // Predicated region
    $region22: #{tpu_custom_call.1} parent=1 // pred_check
      _
    $region23: #{tpu_custom_call.1} parent=1 // pred_check_branch
      %223 = sbr.rel (0) target = $region25
    $region24: #{tpu_custom_call.1} parent=1 // pred_region
      %225 = vsyncadd [#allocation4], 0
      %s227 = sshll.u32 [#allocation7], 4
      %s228 = int_to_ptr.vmem [resolvable:$true] %s227
      %s229 = sshll.u32 %s2, 4
      %s230 = int_to_ptr.hbm [resolvable:$true] %s229
      %232 = dma.vmem_to_hbm [thread:$0]  %s228, 128, %s230, [#allocation4]
    $region25: #{tpu_custom_call.1} parent=1 // pred_fallthru
      _
    // Predicated region
    $region26: #{tpu_custom_call.1} parent=1 // pred_check
      _
    $region27: #{tpu_custom_call.1} parent=1 // pred_check_branch
      %234 = sbr.rel (0) target = $region29
    $region28: #{tpu_custom_call.1} parent=1 // pred_region
      %236 = dma.done [#allocation4], 128
    $region29: #{tpu_custom_call.1} parent=1 // pred_fallthru
      _
    %237 = vsyncpa [#allocation3], 1
    %238 = vsyncpa [#allocation6], 1
    %239 = vsyncpa [#allocation4], 1

</llo_original>
